<compile_context>
chip_gen: v7x
topology: tpu7x:2x2x1
jax: 0.10.0
libtpu: 0.0.40
codegen_flags: <defaults>
</compile_context>

<pallas_src>
import jax
import jax.numpy as jnp
from jax.experimental import pallas as pl
from jax.experimental.pallas import tpu as pltpu

_LANE_WIDTH = 128                      # one f32 vreg wide; 32 boxes per row
_BOXES_PER_ROW = _LANE_WIDTH // 4      # 32
_MAX_BLOCK_ROWS = 4096                 # 4096*128*4B = 2 MiB per f32 block buffer
_MIN_MULTISTEP_ROWS = 32               # below this a single grid step is fine
_TARGET_GRID_STEPS = 4                 # >= 2 steps per v7x TensorCore
_PALLAS_MIN_ELEMS = 128 * 1024         # ~512 KiB f32: below this, fused XLA wins


def _box_convert_kernel(x_ref, o_ref):
    # x_ref / o_ref : [block_rows, 128] in VMEM.  Every 128-lane row starts on
    # a box boundary, so lane position mod 4 identifies the (cx, cy, w, h)
    # phase of each element -- identical on every row.
    x = x_ref[...]
    ax = x.ndim - 1
    lanes = x.shape[ax]  # == _LANE_WIDTH

    # Per-lane constants at (1, lanes); broadcast across sublanes in the
    # selects below (keeps mask generation off the per-data-vreg VPU budget).
    lane = jax.lax.broadcasted_iota(jnp.int32, (1, lanes), dimension=1)
    phase = lane & 3
    is_p0 = phase == 0
    is_p3 = phase == 3
    # Output lane order is (y1, x1, y2, x2) -> signed half (-.5, -.5, +.5, +.5)
    signed_half = jnp.where(phase < 2, -0.5, 0.5).astype(x.dtype)

    # Single in-vreg lane rotations (XLU slot; free-ish in a mem-bound kernel).
    # np.roll semantics: roll(x, s)[p] = x[(p - s) % lanes].
    x_m1 = pltpu.roll(x, shift=1, axis=ax)            # x[p - 1]
    x_m3 = pltpu.roll(x, shift=3, axis=ax)            # x[p - 3]
    x_p1 = pltpu.roll(x, shift=lanes - 1, axis=ax)    # x[p + 1]
    x_p3 = pltpu.roll(x, shift=lanes - 3, axis=ax)    # x[p + 3]

    # phase 0 -> y1 = cy - h/2 : center = x[p+1] (cy), size = x[p+3] (h)
    # phase 1 -> x1 = cx - w/2 : center = x[p-1] (cx), size = x[p+1] (w)
    # phase 2 -> y2 = cy + h/2 : center = x[p-1] (cy), size = x[p+1] (h)
    # phase 3 -> x2 = cx + w/2 : center = x[p-3] (cx), size = x[p-1] (w)
    # Wrapped rotate values are never selected: phases needing +shifts never
    # sit at the end of a row, phases needing -shifts never at the start.
    center = jnp.where(is_p0, x_p1, jnp.where(is_p3, x_m3, x_m1))
    size = jnp.where(is_p0, x_p3, jnp.where(is_p3, x_m1, x_p1))
    o_ref[...] = center + size * signed_half


def _reference(cxcywh: jax.Array) -> jax.Array:
    """Plain-JAX reference (same math as the PyTorch module)."""
    x1 = cxcywh[..., 0] - cxcywh[..., 2] * 0.5
    y1 = cxcywh[..., 1] - cxcywh[..., 3] * 0.5
    x2 = cxcywh[..., 0] + cxcywh[..., 2] * 0.5
    y2 = cxcywh[..., 1] + cxcywh[..., 3] * 0.5
    return jnp.stack([y1, x1, y2, x2], axis=-1)


def _run_kernel(flat_boxes: jax.Array) -> jax.Array:
    """flat_boxes: [boxes, 4] f32 with boxes % 32 == 0 -> [boxes, 4]."""
    boxes = flat_boxes.shape[0]
    assert boxes % _BOXES_PER_ROW == 0, "bulk must be 32-box aligned"
    rows = (boxes * 4) // _LANE_WIDTH
    x2d = flat_boxes.reshape(rows, _LANE_WIDTH)  # free: contiguous view

    if rows <= _MIN_MULTISTEP_ROWS:
        block_rows = rows  # single step; block == full array extents
    else:
        # Aim for >= _TARGET_GRID_STEPS grid steps (DMA/compute overlap and
        # both v7x TCs busy), capped at 2 MiB per block buffer.
        target = -(-rows // _TARGET_GRID_STEPS)
        target = -(-target // 8) * 8  # sublane-multiple block rows
        block_rows = min(_MAX_BLOCK_ROWS, target)

    grid = (pl.cdiv(rows, block_rows),)
    nbytes = rows * _LANE_WIDTH * x2d.dtype.itemsize

    out2d = pl.pallas_call(
        _box_convert_kernel,
        out_shape=jax.ShapeDtypeStruct((rows, _LANE_WIDTH), flat_boxes.dtype),
        grid=grid,
        in_specs=[pl.BlockSpec((block_rows, _LANE_WIDTH), lambda i: (i, 0))],
        out_specs=pl.BlockSpec((block_rows, _LANE_WIDTH), lambda i: (i, 0)),
        compiler_params=pltpu.CompilerParams(
            dimension_semantics=("parallel",),   # shard grid across v7x's 2 TCs
            vmem_limit_bytes=32 * 1024 * 1024,   # headroom vs v5e's 16 MiB default
        ),
        cost_estimate=pl.CostEstimate(
            flops=2 * rows * _LANE_WIDTH,        # one mul + one add per element
            transcendentals=0,
            bytes_accessed=2 * nbytes,           # read X + write X
        ),
    )(x2d)
    return out2d.reshape(boxes, 4)


def cxcywh_to_y1x1y2x2(cxcywh: jax.Array, *, force_pallas: bool = False) -> jax.Array:
    """cxcywh: [B, N, 4] -> y1x1y2x2: [B, N, 4]."""
    B, N, C = cxcywh.shape
    assert C == 4, "last dim must hold (cx, cy, w, h)"
    total = B * N * 4

    # Kernel path is tuned for f32 boxes (the module's dtype); anything else
    # takes the plain fused-XLA path.
    if cxcywh.dtype != jnp.float32:
        return _reference(cxcywh)

    # Small problems: custom-call / pipeline overhead dominates and the fused
    # XLA version already hits roofline (and can fuse into neighbors).
    if total < _PALLAS_MIN_ELEMS and not force_pallas:
        return _reference(cxcywh)

    boxes = B * N
    bulk_boxes = (boxes // _BOXES_PER_ROW) * _BOXES_PER_ROW
    tail_boxes = boxes - bulk_boxes

    flat_boxes = cxcywh.reshape(boxes, 4)  # free view of the contiguous buffer

    if bulk_boxes == 0:
        # Fewer than 32 boxes total: nothing lane-aligned to run on the MXU-free
        # fast path; plain JAX is optimal here.
        return _reference(cxcywh)

    if tail_boxes == 0:
        return _run_kernel(flat_boxes).reshape(B, N, 4)

    # Unaligned box count: aligned bulk through the kernel, tiny (<32 box) tail
    # via plain JAX.  No full-tensor pad / slice-back copies.
    bulk_out = _run_kernel(flat_boxes[:bulk_boxes])
    tail_out = _reference(flat_boxes[bulk_boxes:])
    return jnp.concatenate([bulk_out, tail_out], axis=0).reshape(B, N, 4)


if __name__ == "__main__":
    key = jax.random.PRNGKey(0)
    k_small, k_med, k_odd, k_tiny = jax.random.split(key, 4)

    # 1) Small aligned shape, forced through the kernel (single grid step).
    small = jax.random.uniform(k_small, (2, 64, 4), dtype=jnp.float32)
    out = jax.block_until_ready(cxcywh_to_y1x1y2x2(small, force_pallas=True))
    ref = _reference(small)
    assert out.shape == ref.shape == (2, 64, 4)
    assert out.dtype == ref.dtype
    assert jnp.allclose(out, ref, atol=1e-6, rtol=1e-6)

    # 2) Medium aligned shape: multi-step pipelined grid (rows=128 -> 4 steps).
    med = jax.random.uniform(k_med, (2, 2048, 4), dtype=jnp.float32)
    out = jax.block_until_ready(cxcywh_to_y1x1y2x2(med, force_pallas=True))
    assert jnp.allclose(out, _reference(med), atol=1e-6, rtol=1e-6)

    # 3) Unaligned box count: aligned-bulk kernel + plain-JAX tail, no padding.
    odd = jax.random.uniform(k_odd, (3, 1111, 4), dtype=jnp.float32)
    out = jax.block_until_ready(cxcywh_to_y1x1y2x2(odd, force_pallas=True))
    assert jnp.allclose(out, _reference(odd), atol=1e-6, rtol=1e-6)

    # 4) Tiny-shape fallback path (plain fused XLA) still matches.
    tiny = jax.random.uniform(k_tiny, (2, 8, 4), dtype=jnp.float32)
    out = jax.block_until_ready(cxcywh_to_y1x1y2x2(tiny))
    assert jnp.allclose(out, _reference(tiny), atol=1e-6, rtol=1e-6)

    print("KERNEL_OK")
</pallas_src>

<mosaic_0001>
module attributes {stable_mosaic.version = 11 : i64} {
  func.func @_box_convert_kernel(%arg0: i32, %arg1: memref<4x128xf32, #tpu.memory_space<vmem>>, %arg2: memref<4x128xf32, #tpu.memory_space<vmem>>) attributes {dimension_semantics = [#tpu.dimension_semantics<parallel>], iteration_bounds = array<i64: 1>, scalar_prefetch = 0 : i64, scratch_operands = 0 : i64, tpu.core_type = #tpu.core_type<tc>, window_params = [{transform_indices = @transform_0, window_bounds = array<i64: 4, 128>}, {transform_indices = @transform_1, window_bounds = array<i64: 4, 128>}]} {
    %c0 = arith.constant 0 : index
    %c0_0 = arith.constant 0 : index
    %0 = vector.load %arg1[%c0, %c0_0] : memref<4x128xf32, #tpu.memory_space<vmem>>, vector<4x128xf32>
    %1 = tpu.iota {dimensions = array<i32: 1>} : vector<1x128xi32>
    %c3_i32 = arith.constant 3 : i32
    %2 = vector.broadcast %c3_i32 : i32 to vector<1x128xi32>
    %3 = arith.andi %1, %2 : vector<1x128xi32>
    %c0_i32 = arith.constant 0 : i32
    %4 = vector.broadcast %c0_i32 : i32 to vector<1x128xi32>
    %5 = arith.cmpi eq, %3, %4 : vector<1x128xi32>
    %c3_i32_1 = arith.constant 3 : i32
    %6 = vector.broadcast %c3_i32_1 : i32 to vector<1x128xi32>
    %7 = arith.cmpi eq, %3, %6 : vector<1x128xi32>
    %c2_i32 = arith.constant 2 : i32
    %8 = vector.broadcast %c2_i32 : i32 to vector<1x128xi32>
    %9 = arith.cmpi slt, %3, %8 : vector<1x128xi32>
    %cst = arith.constant -5.000000e-01 : f32
    %cst_2 = arith.constant 5.000000e-01 : f32
    %10 = vector.broadcast %cst : f32 to vector<1x128xf32>
    %11 = vector.broadcast %cst_2 : f32 to vector<1x128xf32>
    %12 = arith.select %9, %10, %11 : vector<1x128xi1>, vector<1x128xf32>
    %c1_i32 = arith.constant 1 : i32
    %13 = tpu.dynamic_rotate %0 by %c1_i32 dim 1 : vector<4x128xf32>, i32 -> vector<4x128xf32>
    %c3_i32_3 = arith.constant 3 : i32
    %14 = tpu.dynamic_rotate %0 by %c3_i32_3 dim 1 : vector<4x128xf32>, i32 -> vector<4x128xf32>
    %c127_i32 = arith.constant 127 : i32
    %15 = tpu.dynamic_rotate %0 by %c127_i32 dim 1 : vector<4x128xf32>, i32 -> vector<4x128xf32>
    %c125_i32 = arith.constant 125 : i32
    %16 = tpu.dynamic_rotate %0 by %c125_i32 dim 1 : vector<4x128xf32>, i32 -> vector<4x128xf32>
    %17 = vector.shape_cast %7 : vector<1x128xi1> to vector<1x128xi1>
    %18 = vector.broadcast %17 : vector<1x128xi1> to vector<4x128xi1>
    %19 = arith.select %18, %14, %13 : vector<4x128xi1>, vector<4x128xf32>
    %20 = vector.shape_cast %5 : vector<1x128xi1> to vector<1x128xi1>
    %21 = vector.broadcast %20 : vector<1x128xi1> to vector<4x128xi1>
    %22 = arith.select %21, %15, %19 : vector<4x128xi1>, vector<4x128xf32>
    %23 = vector.shape_cast %7 : vector<1x128xi1> to vector<1x128xi1>
    %24 = vector.broadcast %23 : vector<1x128xi1> to vector<4x128xi1>
    %25 = arith.select %24, %13, %15 : vector<4x128xi1>, vector<4x128xf32>
    %26 = vector.shape_cast %5 : vector<1x128xi1> to vector<1x128xi1>
    %27 = vector.broadcast %26 : vector<1x128xi1> to vector<4x128xi1>
    %28 = arith.select %27, %16, %25 : vector<4x128xi1>, vector<4x128xf32>
    %29 = vector.broadcast %12 : vector<1x128xf32> to vector<4x128xf32>
    %30 = arith.mulf %28, %29 : vector<4x128xf32>
    %31 = arith.addf %22, %30 : vector<4x128xf32>
    %c0_4 = arith.constant 0 : index
    %c0_5 = arith.constant 0 : index
    %32 = vector.load %arg2[%c0_4, %c0_5] : memref<4x128xf32, #tpu.memory_space<vmem>>, vector<4x128xf32>
    tpu.vector_store %arg2[%c0_4, %c0_5], %31 {strides = array<i32>} : memref<4x128xf32, #tpu.memory_space<vmem>>, vector<4x128xf32>,
    return
  }
  func.func @transform_0(%arg0: i32) -> (i32, i32) {
    %c0_i32 = arith.constant 0 : i32
    %c0_i32_0 = arith.constant 0 : i32
    return %arg0, %c0_i32 : i32, i32
  }
  func.func @transform_1(%arg0: i32) -> (i32, i32) {
    %c0_i32 = arith.constant 0 : i32
    %c0_i32_0 = arith.constant 0 : i32
    return %arg0, %c0_i32 : i32, i32
  }
}

</mosaic_0001>

<llo_original>
// kernel: tpu_custom_call.1
$region0: #{tpu_custom_call.1}
  #allocation0 [shape = 'u32[]', space=smem, size = 0x4, offset = 0x4, fixed_abs, tag = 'smem constant byte address 0x4 - core index']
  #allocation1 [shape = 'u32[144,128]{1,0:T(1,128)}', space=vmem, size = 0x12000, scoped, tag = 'internal scratch']
  %s0 = inlined_call_operand.hbm [shape: f32[4,128], index: 0, kind: input, shape index: {}]
  %s1 = inlined_call_operand.hbm [shape: f32[4,128], index: 1, kind: output, shape index: {}]
  %s2 = sld [smem:[#allocation0]]
  $region18: #{tpu_custom_call.1} parent=0
    _
  %s4 = ssub.s32 1, %s2
  %s5 = scalar_select 0, %s4, %s2
  $region1: #{tpu_custom_call.1} parent=0
    #allocation2 [shape = 'u8[2048]{0}', space=vmem, size = 0x800, scoped, tag = 'input window, operand 0, single buffered']
    #allocation3 [shape = 's32[1]{0}', space=sflag, size = 0x4, scoped, tag = 'scoped memory for tpu_custom_call.1']
    #allocation4 [shape = 's32[1]{0}', space=sflag, size = 0x4, scoped, tag = 'scoped memory for tpu_custom_call.1']
    #allocation5 [shape = 'u8[2048]{0}', space=vmem, size = 0x800, scoped, tag = 'output window, operand 0, single buffered']
    %6 = vsyncpa [#allocation3], 0
    %7 = vsyncpa [#allocation4], 0
    // Predicated region
    $region2: #{tpu_custom_call.1} parent=1 // pred_check
      _
    $region3: #{tpu_custom_call.1} parent=1 // pred_check_branch
      %9 = sbr.rel (0) target = $region5
    $region4: #{tpu_custom_call.1} parent=1 // pred_region
      %s11 = ssub.s32 64, 64
      %12 = vsyncadd [#allocation3], %s11
      %s14 = sshll.u32 [#allocation2], 4
      %s15 = int_to_ptr.vmem [resolvable:$true] %s14
      %17 = dma.hbm_to_vmem [thread:$0]  %s0, 64, %s15, [#allocation3]
    $region5: #{tpu_custom_call.1} parent=1 // pred_fallthru
      _
    // Predicated region
    $region6: #{tpu_custom_call.1} parent=1 // pred_check
      _
    $region7: #{tpu_custom_call.1} parent=1 // pred_check_branch
      %19 = sbr.rel (0) target = $region9
    $region8: #{tpu_custom_call.1} parent=1 // pred_region
      %20 = dma.done [#allocation3], 64
    $region9: #{tpu_custom_call.1} parent=1 // pred_fallthru
      _
    %v21 = vld [vmem:[#allocation2] sm:$0xf]
    %v22 = vlaneseq
    %v23 = vand.u32 %v22, 127
    %v24 = vand.u32 %v23, 3
    %vm25 = vcmp.eq.s32.totalorder %v24, 0
    %vm26 = vcmp.eq.s32.totalorder %v24, 3
    %vm27 = vcmp.lt.s32.totalorder %v24, 2
    %v28 = vsel %vm27, -0.5, 0.5
    %29 = vrot.lane.b32.xlu0 %v21, 1
    %v30 = vpop.permute.xlu0 %29
    %31 = vrot.lane.b32.xlu0 %v21, 3
    %v32 = vpop.permute.xlu0 %31
    %33 = vrot.lane.b32.xlu0 %v21, 127
    %v34 = vpop.permute.xlu0 %33
    %35 = vrot.lane.b32.xlu0 %v21, 125
    %v36 = vpop.permute.xlu0 %35
    %v37 = vsel %vm26, 1, 0
    %vm38 = vcmp.eq.s32.totalorder %v37, 1
    %v39 = vsel %vm38, %v32, %v30
    %v40 = vsel %vm25, 1, 0
    %vm41 = vcmp.eq.s32.totalorder %v40, 1
    %v42 = vsel %vm41, %v34, %v39
    %v43 = vsel %vm38, %v30, %v34
    %v44 = vsel %vm41, %v36, %v43
    %v45 = vmul.f32 %v44, %v28
    %v46 = vadd.f32 %v42, %v45
    %47 = vst [vmem:[#allocation5] sm:$0xf] %v46
    // Predicated region
    $region10: #{tpu_custom_call.1} parent=1 // pred_check
      _
    $region11: #{tpu_custom_call.1} parent=1 // pred_check_branch
      %49 = sbr.rel (0) target = $region13
    $region12: #{tpu_custom_call.1} parent=1 // pred_region
      %s51 = ssub.s32 64, 64
      %52 = vsyncadd [#allocation4], %s51
      %s54 = sshll.u32 [#allocation5], 4
      %s55 = int_to_ptr.vmem [resolvable:$true] %s54
      %57 = dma.vmem_to_hbm [thread:$0]  %s55, 64, %s1, [#allocation4]
    $region13: #{tpu_custom_call.1} parent=1 // pred_fallthru
      _
    // Predicated region
    $region14: #{tpu_custom_call.1} parent=1 // pred_check
      _
    $region15: #{tpu_custom_call.1} parent=1 // pred_check_branch
      %59 = sbr.rel (0) target = $region17
    $region16: #{tpu_custom_call.1} parent=1 // pred_region
      %60 = dma.done [#allocation4], 64
    $region17: #{tpu_custom_call.1} parent=1 // pred_fallthru
      _
    %61 = vsyncpa [#allocation3], 1
    %62 = vsyncpa [#allocation4], 1

</llo_original>
